<compile_context>
chip_gen: v7x
topology: tpu7x:2x2x1
jax: 0.10.0
libtpu: 0.0.40
codegen_flags: <defaults>
</compile_context>

<pallas_src>
import jax
import jax.numpy as jnp
from jax.experimental import pallas as pl
from jax.experimental.pallas import tpu as pltpu


def _classifier_kernel(cls_ref, w1_ref, b1_ref, w2_ref, b2_ref, o_ref):
    # cls_ref: (tb, E)  bf16   cls-token activations for this row tile
    # w1_ref:  (E, E)   bf16   fc1 weight (already transposed to (in, out))
    # b1_ref:  (1, E)   f32    fc1 bias
    # w2_ref:  (E, CL)  bf16   fc2 weight (already transposed to (in, out))
    # b2_ref:  (1, CL)  f32    fc2 bias
    # o_ref:   (tb, CL)        logits
    h = jnp.dot(cls_ref[...], w1_ref[...],
                preferred_element_type=jnp.float32)          # MXU, f32 acc
    h = jnp.tanh(h + b1_ref[...])                            # VPU add + EUP tanh (f32)
    logits = jnp.dot(h.astype(w2_ref.dtype), w2_ref[...],
                     preferred_element_type=jnp.float32)     # MXU, f32 acc
    o_ref[...] = (logits + b2_ref[...]).astype(o_ref.dtype)  # aligned full-block store


def _pick_row_tile(B):
    # Biggest power-of-two row tile (multiple of 8 sublanes) that divides B;
    # tiny batches fall back to a single full-batch block (still legal: block
    # dims equal to the full array dims are always allowed).
    for t in (512, 256, 128, 64, 32, 16, 8):
        if B % t == 0:
            return t
    return B


def classifier_forward(x, fc1_w, fc1_b, fc2_w, fc2_b):
    """x: (B, S, E).  fc1_w: (E, E), fc1_b: (E,), fc2_w: (CL, E), fc2_b: (CL,).
    Returns logits of shape (B, CL), matching the PyTorch Classifier."""
    B, S, E = x.shape
    CL = fc2_w.shape[0]

    # Tiny strided slice: only B*E elements read from HBM (never the full seq).
    cls = x[:, 0, :]                                     # (B, E)

    # bf16 operands for the MXU; biases stay f32.
    cls_bf = cls.astype(jnp.bfloat16)
    w1_t = fc1_w.T.astype(jnp.bfloat16)                  # (E, E)  (in, out)
    w2_t = fc2_w.T.astype(jnp.bfloat16)                  # (E, CL) (in, out)
    b1_2d = fc1_b.reshape(1, E).astype(jnp.float32)
    b2_2d = fc2_b.reshape(1, CL).astype(jnp.float32)

    tb = _pick_row_tile(B)
    grid = (B // tb,)

    out_bytes = B * CL * jnp.dtype(x.dtype).itemsize
    cost = pl.CostEstimate(
        flops=2 * B * E * E + 2 * B * E * CL,
        transcendentals=B * E,
        bytes_accessed=(cls_bf.size * 2 + w1_t.size * 2 + w2_t.size * 2
                        + b1_2d.size * 4 + b2_2d.size * 4 + out_bytes),
    )

    out = pl.pallas_call(
        _classifier_kernel,
        out_shape=jax.ShapeDtypeStruct((B, CL), x.dtype),
        grid_spec=pltpu.PrefetchScalarGridSpec(
            num_scalar_prefetch=0,
            grid=grid,
            in_specs=[
                pl.BlockSpec((tb, E), lambda i: (i, 0)),   # cls rows (tiled)
                pl.BlockSpec((E, E), lambda i: (0, 0)),    # fc1 weight (resident)
                pl.BlockSpec((1, E), lambda i: (0, 0)),    # fc1 bias   (resident)
                pl.BlockSpec((E, CL), lambda i: (0, 0)),   # fc2 weight (resident)
                pl.BlockSpec((1, CL), lambda i: (0, 0)),   # fc2 bias   (resident)
            ],
            out_specs=pl.BlockSpec((tb, CL), lambda i: (i, 0)),
        ),
        compiler_params=pltpu.CompilerParams(
            dimension_semantics=("parallel",)),
        cost_estimate=cost,
    )(cls_bf, w1_t, b1_2d, w2_t, b2_2d)
    return out


def _reference(x, fc1_w, fc1_b, fc2_w, fc2_b):
    """Pure-JAX f32 reference matching the PyTorch forward."""
    cls = x[:, 0, :]
    h = jnp.tanh(cls @ fc1_w.T + fc1_b)
    return h @ fc2_w.T + fc2_b


if __name__ == "__main__":
    # Small ViT-like config: batch=2, seq=8 (1 cls + 7 patches), embed=32, classes=10
    B, S, E, CL = 2, 8, 32, 10

    key = jax.random.PRNGKey(0)
    kx, kw1, kb1, kw2, kb2 = jax.random.split(key, 5)

    x = jax.random.normal(kx, (B, S, E), dtype=jnp.float32)
    fc1_w = jax.random.normal(kw1, (E, E), dtype=jnp.float32) * 0.1
    fc1_b = jax.random.normal(kb1, (E,), dtype=jnp.float32) * 0.1
    fc2_w = jax.random.normal(kw2, (CL, E), dtype=jnp.float32) * 0.1
    fc2_b = jax.random.normal(kb2, (CL,), dtype=jnp.float32) * 0.1

    out = classifier_forward(x, fc1_w, fc1_b, fc2_w, fc2_b)
    out = jax.block_until_ready(out)

    ref = _reference(x, fc1_w, fc1_b, fc2_w, fc2_b)
    assert out.shape == (B, CL), out.shape
    # Tolerance loosened because matmul operands are cast to bf16 (per perf
    # review); accumulation is f32 so the error stays at bf16-cast level.
    assert jnp.allclose(out, ref, atol=5e-2, rtol=5e-2), \
        float(jnp.max(jnp.abs(out - ref)))

    print("KERNEL_OK")
</pallas_src>

<mosaic_0001>
module attributes {stable_mosaic.version = 11 : i64} {
  func.func @_classifier_kernel(%arg0: i32, %arg1: memref<2x32xbf16, #tpu.memory_space<vmem>>, %arg2: memref<32x32xbf16, #tpu.memory_space<vmem>>, %arg3: memref<1x32xf32, #tpu.memory_space<vmem>>, %arg4: memref<32x10xbf16, #tpu.memory_space<vmem>>, %arg5: memref<1x10xf32, #tpu.memory_space<vmem>>, %arg6: memref<2x10xf32, #tpu.memory_space<vmem>>) attributes {dimension_semantics = [#tpu.dimension_semantics<parallel>], iteration_bounds = array<i64: 1>, scalar_prefetch = 0 : i64, scratch_operands = 0 : i64, tpu.core_type = #tpu.core_type<tc>, window_params = [{transform_indices = @transform_0, window_bounds = array<i64: 2, 32>}, {pipeline_mode = #tpu.pipeline_mode<synchronous>, transform_indices = @transform_1, window_bounds = array<i64: 32, 32>}, {pipeline_mode = #tpu.pipeline_mode<synchronous>, transform_indices = @transform_2, window_bounds = array<i64: 1, 32>}, {pipeline_mode = #tpu.pipeline_mode<synchronous>, transform_indices = @transform_3, window_bounds = array<i64: 32, 10>}, {pipeline_mode = #tpu.pipeline_mode<synchronous>, transform_indices = @transform_4, window_bounds = array<i64: 1, 10>}, {transform_indices = @transform_5, window_bounds = array<i64: 2, 10>}]} {
    %c0 = arith.constant 0 : index
    %c0_0 = arith.constant 0 : index
    %0 = vector.load %arg1[%c0, %c0_0] : memref<2x32xbf16, #tpu.memory_space<vmem>>, vector<2x32xbf16>
    %c0_1 = arith.constant 0 : index
    %c0_2 = arith.constant 0 : index
    %1 = vector.load %arg2[%c0_1, %c0_2] : memref<32x32xbf16, #tpu.memory_space<vmem>>, vector<32x32xbf16>
    %cst = arith.constant dense<0.000000e+00> : vector<2x32xf32>
    %2 = tpu.matmul %0, %1, %cst {dimension_numbers = #tpu.dot_dimension_numbers<[1], [0], [0], [1], [0, 0, 1, 1], [], []>} : vector<2x32xbf16>, vector<32x32xbf16>, vector<2x32xf32> -> vector<2x32xf32>
    %c0_3 = arith.constant 0 : index
    %c0_4 = arith.constant 0 : index
    %3 = vector.load %arg3[%c0_3, %c0_4] : memref<1x32xf32, #tpu.memory_space<vmem>>, vector<1x32xf32>
    %4 = vector.broadcast %3 : vector<1x32xf32> to vector<2x32xf32>
    %5 = arith.addf %2, %4 : vector<2x32xf32>
    %6 = math.tanh %5 : vector<2x32xf32>
    %7 = arith.truncf %6 : vector<2x32xf32> to vector<2x32xbf16>
    %c0_5 = arith.constant 0 : index
    %c0_6 = arith.constant 0 : index
    %8 = vector.load %arg4[%c0_5, %c0_6] : memref<32x10xbf16, #tpu.memory_space<vmem>>, vector<32x10xbf16>
    %cst_7 = arith.constant dense<0.000000e+00> : vector<2x10xf32>
    %9 = tpu.matmul %7, %8, %cst_7 {dimension_numbers = #tpu.dot_dimension_numbers<[1], [0], [0], [1], [0, 0, 1, 1], [], []>} : vector<2x32xbf16>, vector<32x10xbf16>, vector<2x10xf32> -> vector<2x10xf32>
    %c0_8 = arith.constant 0 : index
    %c0_9 = arith.constant 0 : index
    %10 = vector.load %arg5[%c0_8, %c0_9] : memref<1x10xf32, #tpu.memory_space<vmem>>, vector<1x10xf32>
    %11 = vector.broadcast %10 : vector<1x10xf32> to vector<2x10xf32>
    %12 = arith.addf %9, %11 : vector<2x10xf32>
    %c0_10 = arith.constant 0 : index
    %c0_11 = arith.constant 0 : index
    %13 = vector.load %arg6[%c0_10, %c0_11] : memref<2x10xf32, #tpu.memory_space<vmem>>, vector<2x10xf32>
    tpu.vector_store %arg6[%c0_10, %c0_11], %12 {strides = array<i32>} : memref<2x10xf32, #tpu.memory_space<vmem>>, vector<2x10xf32>,
    return
  }
  func.func @transform_0(%arg0: i32) -> (i32, i32) {
    %c0_i32 = arith.constant 0 : i32
    %c0_i32_0 = arith.constant 0 : i32
    return %arg0, %c0_i32 : i32, i32
  }
  func.func @transform_1(%arg0: i32) -> (i32, i32) {
    %c0_i32 = arith.constant 0 : i32
    %c0_i32_0 = arith.constant 0 : i32
    %c0_i32_1 = arith.constant 0 : i32
    return %c0_i32, %c0_i32_0 : i32, i32
  }
  func.func @transform_2(%arg0: i32) -> (i32, i32) {
    %c0_i32 = arith.constant 0 : i32
    %c0_i32_0 = arith.constant 0 : i32
    %c0_i32_1 = arith.constant 0 : i32
    return %c0_i32, %c0_i32_0 : i32, i32
  }
  func.func @transform_3(%arg0: i32) -> (i32, i32) {
    %c0_i32 = arith.constant 0 : i32
    %c0_i32_0 = arith.constant 0 : i32
    %c0_i32_1 = arith.constant 0 : i32
    return %c0_i32, %c0_i32_0 : i32, i32
  }
  func.func @transform_4(%arg0: i32) -> (i32, i32) {
    %c0_i32 = arith.constant 0 : i32
    %c0_i32_0 = arith.constant 0 : i32
    %c0_i32_1 = arith.constant 0 : i32
    return %c0_i32, %c0_i32_0 : i32, i32
  }
  func.func @transform_5(%arg0: i32) -> (i32, i32) {
    %c0_i32 = arith.constant 0 : i32
    %c0_i32_0 = arith.constant 0 : i32
    return %arg0, %c0_i32 : i32, i32
  }
}

</mosaic_0001>

<llo_original>
// kernel: tpu_custom_call.1
$region0: #{tpu_custom_call.1}
  #allocation0 [shape = 'u32[]', space=smem, size = 0x4, offset = 0x4, fixed_abs, tag = 'smem constant byte address 0x4 - core index']
  #allocation1 [shape = 'u32[144,128]{1,0:T(1,128)}', space=vmem, size = 0x12000, scoped, tag = 'internal scratch']
  %s0 = inlined_call_operand.vmem [shape: bf16[2,32], index: 0, kind: input, shape index: {}]
  %s1 = inlined_call_operand.vmem [shape: bf16[32,32], index: 1, kind: input, shape index: {}]
  %s2 = inlined_call_operand.vmem [shape: f32[1,32], index: 2, kind: input, shape index: {}]
  %s3 = inlined_call_operand.vmem [shape: bf16[32,10], index: 3, kind: input, shape index: {}]
  %s4 = inlined_call_operand.vmem [shape: f32[1,10], index: 4, kind: input, shape index: {}]
  %s5 = inlined_call_operand.hbm [shape: f32[2,10], index: 5, kind: output, shape index: {}]
  %s6 = sld [smem:[#allocation0]]
  $region30: #{tpu_custom_call.1} parent=0
    _
  %s8 = ssub.s32 1, %s6
  %s9 = scalar_select 0, %s8, %s6
  $region1: #{tpu_custom_call.1} parent=0
    #allocation2 [shape = 'u8[1024]{0}', space=vmem, size = 0x400, scoped, tag = 'output window, operand 0, single buffered']
    #allocation3 [shape = 's32[1]{0}', space=sflag, size = 0x4, scoped, tag = 'scoped memory for tpu_custom_call.1']
    %10 = vsyncpa [#allocation3], 0
    // Predicated region
    $region2: #{tpu_custom_call.1} parent=1 // pred_check
      _
    $region3: #{tpu_custom_call.1} parent=1 // pred_check_branch
      %12 = sbr.rel (0) target = $region5
    $region4: #{tpu_custom_call.1} parent=1 // pred_region
      _
    $region5: #{tpu_custom_call.1} parent=1 // pred_fallthru
      _
    // Predicated region
    $region6: #{tpu_custom_call.1} parent=1 // pred_check
      _
    $region7: #{tpu_custom_call.1} parent=1 // pred_check_branch
      %14 = sbr.rel (0) target = $region9
    $region8: #{tpu_custom_call.1} parent=1 // pred_region
      _
    $region9: #{tpu_custom_call.1} parent=1 // pred_fallthru
      _
    // Predicated region
    $region10: #{tpu_custom_call.1} parent=1 // pred_check
      _
    $region11: #{tpu_custom_call.1} parent=1 // pred_check_branch
      %16 = sbr.rel (0) target = $region13
    $region12: #{tpu_custom_call.1} parent=1 // pred_region
      _
    $region13: #{tpu_custom_call.1} parent=1 // pred_fallthru
      _
    // Predicated region
    $region14: #{tpu_custom_call.1} parent=1 // pred_check
      _
    $region15: #{tpu_custom_call.1} parent=1 // pred_check_branch
      %18 = sbr.rel (0) target = $region17
    $region16: #{tpu_custom_call.1} parent=1 // pred_region
      _
    $region17: #{tpu_custom_call.1} parent=1 // pred_fallthru
      _
    // Predicated region
    $region18: #{tpu_custom_call.1} parent=1 // pred_check
      _
    $region19: #{tpu_custom_call.1} parent=1 // pred_check_branch
      %20 = sbr.rel (0) target = $region21
    $region20: #{tpu_custom_call.1} parent=1 // pred_region
      _
    $region21: #{tpu_custom_call.1} parent=1 // pred_fallthru
      _
    %v22 = vld [vmem:[%s0] sm:$0x1]
    %v23 = vld [vmem:[%s1] sm:$0xf]
    %v24 = vld [vmem:[%s1 + $0x4] sm:$0xf]
    %v25 = vld [vmem:[%s1 + $0x8] sm:$0xf]
    %v26 = vld [vmem:[%s1 + $0xc] sm:$0xf]
    %v27 = vld [vmem:[%s2] sm:$0x1]
    %v29 = vlaneseq
    %v30 = vshrl.u32 %v29, 7
    %v31 = vsub.s32 0, %v30
    %v32 = vrot.slane %v27, %v31
    %v38 = vunpack.c.l.b16 %v23
    %v39 = vunpack.c.l.b16 %v24
    %v40 = vunpack.c.l.b16 %v25
    %v41 = vunpack.c.l.b16 %v26
    %v42 = vpack.c.b16 %v39, %v38
    %v43 = vpack.c.b16 %v41, %v40
    %vm46 = vcmask 261120
    %v48 = vsel %vm46, %v22, 0
    %50 = vmatprep.subr.bf16.mxu0 0
    %51 = vmatpush1.bf16.msra.mxu0 %v42
    %52 = vmatprep.subr.bf16.mxu0 0
    %53 = vmatpush1.bf16.msra.mxu0 %v43
    %54 = vmatprep.subr.bf16.mxu0 0
    %55 = vmatpush1.bf16.msra.mxu0 0
    %56 = vmatprep.subr.bf16.mxu0 0
    %57 = vmatpush1.bf16.msra.mxu0 0
    %58 = vmatprep.subr.bf16.mxu0 0
    %59 = vmatpush1.bf16.msra.mxu0 0
    %60 = vmatprep.subr.bf16.mxu0 0
    %61 = vmatpush1.bf16.msra.mxu0 0
    %62 = vmatprep.subr.bf16.mxu0 0
    %63 = vmatpush1.bf16.msra.mxu0 0
    %64 = vmatprep.subr.bf16.mxu0 0
    %65 = vmatpush1.bf16.msra.mxu0 0
    %66 = vmatprep.subr.bf16.mxu0 0
    %67 = vmatpush1.bf16.msra.mxu0 0
    %68 = vmatprep.subr.bf16.mxu0 0
    %69 = vmatpush1.bf16.msra.mxu0 0
    %70 = vmatprep.subr.bf16.mxu0 0
    %71 = vmatpush1.bf16.msra.mxu0 0
    %72 = vmatprep.subr.bf16.mxu0 0
    %73 = vmatpush1.bf16.msra.mxu0 0
    %74 = vmatprep.subr.bf16.mxu0 0
    %75 = vmatpush1.bf16.msra.mxu0 0
    %76 = vmatprep.subr.bf16.mxu0 0
    %77 = vmatpush1.bf16.msra.mxu0 0
    %78 = vmatprep.subr.bf16.mxu0 0
    %79 = vmatpush1.bf16.msra.mxu0 0
    %80 = vmatprep.subr.bf16.mxu0 0
    %81 = vmatpush1.bf16.msra.mxu0 0
    %82 = vmatprep.mubr.bf16.mxu0 0
    %83 = vmatmul.mubr.bf16.gmra.mrb[0].mxu0 %v48
    %v84 = vpop.f32.mrb[0].mxu0
    %v85 = vadd.f32 %v32, %v84
    %v86 = vpop.f32.mrb[0].mxu0
    %v87 = vpop.f32.mrb[0].mxu0
    %v88 = vpop.f32.mrb[0].mxu0
    %89 = vdwg.mxu0
    %v90 = vtanh.pop %v85
    %v91 = vpack.c.bf16 %v90, %v90
    %v92 = vld [vmem:[%s3] sm:$0xf]
    %v93 = vld [vmem:[%s3 + $0x4] sm:$0xf]
    %v94 = vld [vmem:[%s3 + $0x8] sm:$0xf]
    %v95 = vld [vmem:[%s3 + $0xc] sm:$0xf]
    %v96 = vld [vmem:[%s4] sm:$0x1]
    %v98 = vlaneseq
    %v99 = vshrl.u32 %v98, 7
    %v100 = vsub.s32 0, %v99
    %v101 = vrot.slane %v96, %v100
    %v107 = vunpack.c.l.b16 %v92
    %v108 = vunpack.c.l.b16 %v93
    %v109 = vunpack.c.l.b16 %v94
    %v110 = vunpack.c.l.b16 %v95
    %v111 = vpack.c.b16 %v108, %v107
    %v112 = vpack.c.b16 %v110, %v109
    %v116 = vsel %vm46, %v91, 0
    %118 = vmatprep.subr.bf16.mxu0 0
    %119 = vmatpush1.bf16.msra.mxu0 %v111
    %120 = vmatprep.subr.bf16.mxu0 0
    %121 = vmatpush1.bf16.msra.mxu0 %v112
    %122 = vmatprep.subr.bf16.mxu0 0
    %123 = vmatpush1.bf16.msra.mxu0 0
    %124 = vmatprep.subr.bf16.mxu0 0
    %125 = vmatpush1.bf16.msra.mxu0 0
    %126 = vmatprep.subr.bf16.mxu0 0
    %127 = vmatpush1.bf16.msra.mxu0 0
    %128 = vmatprep.subr.bf16.mxu0 0
    %129 = vmatpush1.bf16.msra.mxu0 0
    %130 = vmatprep.subr.bf16.mxu0 0
    %131 = vmatpush1.bf16.msra.mxu0 0
    %132 = vmatprep.subr.bf16.mxu0 0
    %133 = vmatpush1.bf16.msra.mxu0 0
    %134 = vmatprep.subr.bf16.mxu0 0
    %135 = vmatpush1.bf16.msra.mxu0 0
    %136 = vmatprep.subr.bf16.mxu0 0
    %137 = vmatpush1.bf16.msra.mxu0 0
    %138 = vmatprep.subr.bf16.mxu0 0
    %139 = vmatpush1.bf16.msra.mxu0 0
    %140 = vmatprep.subr.bf16.mxu0 0
    %141 = vmatpush1.bf16.msra.mxu0 0
    %142 = vmatprep.subr.bf16.mxu0 0
    %143 = vmatpush1.bf16.msra.mxu0 0
    %144 = vmatprep.subr.bf16.mxu0 0
    %145 = vmatpush1.bf16.msra.mxu0 0
    %146 = vmatprep.subr.bf16.mxu0 0
    %147 = vmatpush1.bf16.msra.mxu0 0
    %148 = vmatprep.subr.bf16.mxu0 0
    %149 = vmatpush1.bf16.msra.mxu0 0
    %150 = vmatprep.mubr.bf16.mxu0 0
    %151 = vmatmul.mubr.bf16.gmra.mrb[0].mxu0 %v116
    %v152 = vpop.f32.mrb[0].mxu0
    %v153 = vadd.f32 %v101, %v152
    %v154 = vpop.f32.mrb[0].mxu0
    %v155 = vpop.f32.mrb[0].mxu0
    %v156 = vpop.f32.mrb[0].mxu0
    %157 = vdwg.mxu0
    %vm158 = vcmask 74752
    %159 = vst.msk [vmem:[#allocation2] sm:$0x3] %vm158, %v153
    // Predicated region
    $region22: #{tpu_custom_call.1} parent=1 // pred_check
      _
    $region23: #{tpu_custom_call.1} parent=1 // pred_check_branch
      %161 = sbr.rel (0) target = $region25
    $region24: #{tpu_custom_call.1} parent=1 // pred_region
      %s163 = ssub.s32 32, 32
      %164 = vsyncadd [#allocation3], %s163
      %s166 = sshll.u32 [#allocation2], 4
      %s167 = int_to_ptr.vmem [resolvable:$true] %s166
      %169 = dma.vmem_to_hbm [thread:$0]  %s167, 32, %s5, [#allocation3]
    $region25: #{tpu_custom_call.1} parent=1 // pred_fallthru
      _
    // Predicated region
    $region26: #{tpu_custom_call.1} parent=1 // pred_check
      _
    $region27: #{tpu_custom_call.1} parent=1 // pred_check_branch
      %171 = sbr.rel (0) target = $region29
    $region28: #{tpu_custom_call.1} parent=1 // pred_region
      %172 = dma.done [#allocation3], 32
    $region29: #{tpu_custom_call.1} parent=1 // pred_fallthru
      _
    %173 = vsyncpa [#allocation3], 1

</llo_original>
